<compile_context>
chip_gen: v6e
topology: v6e:2x2x1
jax: 0.10.0
libtpu: 0.0.40
codegen_flags: <defaults>
</compile_context>

<pallas_src>
import functools

import numpy as np
import jax
import jax.numpy as jnp
from jax import lax
from jax.experimental import pallas as pl
from jax.experimental.pallas import tpu as pltpu


TB = 8  # images per grid step (= rows per lane-dense output tile)

# Backbone geometry implied by the module (fc1 in-features = 256 = 16 * 4 * 4).
_CIN, _H, _W = 4, 16, 16
_C1, _C2 = 8, 16
_H1, _W1 = _H // 2, _W // 2      # 8, 8
_H2, _W2 = _H1 // 2, _W1 // 2    # 4, 4
_D = 32


# -----------------------------------------------------------------------------
# pltpu.roll convention probe (run once, outside jit): find the shift value s
# such that pltpu.roll(x, s, axis=-1)[..., l] == x[..., (l + delta) % n].
# -----------------------------------------------------------------------------
_ROLL_NUMPY_CONVENTION = None


def _roll_shift_for(delta, n):
    global _ROLL_NUMPY_CONVENTION
    if _ROLL_NUMPY_CONVENTION is None:
        def probe(x_ref, o_ref):
            o_ref[...] = pltpu.roll(x_ref[...], shift=1, axis=1)

        xs = jnp.broadcast_to(jnp.arange(128, dtype=jnp.float32), (8, 128))
        out = pl.pallas_call(
            probe, out_shape=jax.ShapeDtypeStruct((8, 128), jnp.float32))(xs)
        # numpy convention: out[l] = x[(l - shift) % n]  ->  out[0] == 127
        _ROLL_NUMPY_CONVENTION = bool(jax.device_get(out)[0, 0] == 127.0)
    return (n - delta) % n if _ROLL_NUMPY_CONVENTION else delta


# -----------------------------------------------------------------------------
# One-time constant folding (all outside the kernel / outside the hot path)
# -----------------------------------------------------------------------------
def _conv_band(w_oihw, w_out, w_pad):
    """[KH, w_pad*Cin, w_out*Cout] band matrices folding width taps + channels."""
    w = np.asarray(w_oihw, np.float32)
    c_out, c_in, kh, kw_n = w.shape
    m = np.zeros((kh, w_pad, c_in, w_out, c_out), np.float32)
    for k in range(kh):
        for wo in range(w_out):
            for kw in range(kw_n):
                m[k, wo + kw, :, wo, :] = w[:, :, k, kw].T
    return m.reshape(kh, w_pad * c_in, w_out * c_out)


def _fold_bn(conv_b, bn, eps=1e-5):
    gamma, beta, mean, var = (np.asarray(t, np.float32) for t in bn)
    scale = gamma / np.sqrt(var + eps)
    bias = (np.asarray(conv_b, np.float32) - mean) * scale + beta
    return scale, bias


def prepare_constants(params, compute_dtype=jnp.bfloat16):
    """Fold BN, pooling compaction, row selection and the NCHW flatten into
    matmul-ready constants (done once; results live on device)."""
    c1, cin = params["conv1_w"].shape[:2]
    c2 = params["conv2_w"].shape[0]
    d = params["fc1_w"].shape[0]
    nc = params["adapter_w"].shape[0]
    h, w, h1, w1, h2, w2 = _H, _W, _H1, _W1, _H2, _W2

    s1, b1 = _fold_bn(params["conv1_b"], params["bn1"])
    s2, b2 = _fold_bn(params["conv2_b"], params["bn2"])

    # conv1 band matrices: [3, (W+2)*Cin, W*C1] = [3, 72, 128]
    m1 = _conv_band(params["conv1_w"], w, w + 2)

    # conv2 band matrices with the pool-1 lane compaction and conv2's horizontal
    # zero padding folded in.  Operand lanes are (w in [0,16)) * C1 + c1 of the
    # width-maxed conv1 activation; only even-w lanes carry data.
    m2 = _conv_band(params["conv2_w"], w1, w1 + 2).reshape(3, w1 + 2, c1, w1 * c2)
    m2f = np.zeros((3, w, c1, w1 * c2), np.float32)
    m2f[:, 0::2] = m2[:, 1:1 + w1]
    m2f = m2f.reshape(3, w * c1, w1 * c2)                        # [3, 128, 128]

    # conv2 row selectors: fold pool-1 row decimation (a = 0/1) and conv2's
    # vertical zero padding.  Row k*TB*H1 + b*H1 + h2 of (rp_a @ y1) is the
    # conv2 operand row for kernel-row k, image b, output row h2.
    rp = np.zeros((2, 3 * TB * h1, TB * h), np.float32)
    for a in range(2):
        for k in range(3):
            for b in range(TB):
                for r in range(h1):
                    p = r + k
                    if 1 <= p <= h1:
                        rp[a, k * TB * h1 + b * h1 + r,
                           b * h + 2 * (p - 1) + a] = 1.0

    # fc1 row selectors (pool-2 row decimation folded in).
    sel = np.zeros((2, h2 * TB, TB * h1), np.float32)
    for a in range(2):
        for r in range(h2):
            for b in range(TB):
                sel[a, r * TB + b, b * h1 + 2 * r + a] = 1.0

    # fc1 weights with the NCHW flatten and pool-2 lane compaction folded in.
    wf = np.asarray(params["fc1_w"], np.float32).reshape(d, c2, h2, w2)
    wff = np.zeros((h2, w1, c2, d), np.float32)
    wff[:, 0::2] = np.transpose(wf, (2, 3, 1, 0))
    wff = wff.reshape(h2, w1 * c2, d)                             # [4, 128, 32]

    # adapter, zero padded to a lane-dense 128-wide output block.
    wa = np.zeros((d, 128), np.float32)
    wa[:, :nc] = np.asarray(params["adapter_w"], np.float32).T
    ba = np.zeros((1, 128), np.float32)
    ba[0, :nc] = np.asarray(params["adapter_b"], np.float32)

    cdt = compute_dtype
    return {
        "m1": jnp.asarray(m1, cdt),
        "m2f": jnp.asarray(m2f, cdt),
        "rpa": jnp.asarray(rp[0], cdt),
        "rpb": jnp.asarray(rp[1], cdt),
        "sela": jnp.asarray(sel[0], cdt),
        "selb": jnp.asarray(sel[1], cdt),
        "wff": jnp.asarray(wff, cdt),
        "wa": jnp.asarray(wa, cdt),
        "sb1": jnp.asarray(np.stack([np.tile(s1, w), np.tile(b1, w)]), jnp.float32),
        "sb2": jnp.asarray(np.stack([np.tile(s2, w1), np.tile(b2, w1)]), jnp.float32),
        "fb": jnp.asarray(np.asarray(params["fc1_b"], np.float32).reshape(1, d)),
        "ba": jnp.asarray(ba),
    }


# -----------------------------------------------------------------------------
# Fused forward (one pallas_call, grid over image tiles + one latent step)
# -----------------------------------------------------------------------------
@functools.partial(jax.jit, static_argnames=("num_classes", "shift1", "shift2"))
def _forward_jit(x_nchw, latent_input, consts, *, num_classes, shift1, shift2):
    b, cin, h, w = x_nchw.shape
    assert (cin, h, w) == (_CIN, _H, _W)
    d = consts["wff"].shape[-1]
    cdt = consts["m1"].dtype
    f32 = jnp.float32

    n_live = -(-b // TB)
    b_pad = n_live * TB
    if latent_input is None:
        r = 0
        n_lat = 1
        latent_tiles = jnp.zeros((n_lat, TB, d), cdt)
    else:
        r = latent_input.shape[0]
        n_lat = max(1, -(-r // TB))
        lat = jnp.zeros((n_lat * TB, d), cdt).at[:r].set(latent_input.astype(cdt))
        latent_tiles = lat.reshape(n_lat, TB, d)

    # NCHW -> three row-shifted, zero-padded, merged-lane tiles (im2col over the
    # 3 conv kernel rows), so conv1 needs no in-kernel row gather.
    x = jnp.transpose(x_nchw, (0, 2, 3, 1)).astype(cdt)           # [B, H, W, Cin]
    x = jnp.pad(x, ((0, b_pad - b), (1, 1), (1, 1), (0, 0)))       # [Bp, 18, 18, 4]
    xr = jnp.stack([x[:, k:k + h] for k in range(3)], axis=1)      # [Bp, 3, 16, 18, 4]
    xr = xr.reshape(n_live, TB, 3, h, (w + 2) * cin)
    xr = jnp.transpose(xr, (0, 2, 1, 3, 4)).reshape(
        n_live, 3, TB * h, (w + 2) * cin)                          # [n, 3, 128, 72]

    rows1 = TB * h            # 128
    rows2 = TB * _H1          # 64
    n_steps = n_live + n_lat

    def kernel(x_ref, lat_ref, m1_ref, sb1_ref, rpa_ref, rpb_ref, m2f_ref,
               sb2_ref, sela_ref, selb_ref, wff_ref, fb_ref, wa_ref, ba_ref,
               out_ref):
        i = pl.program_id(0)

        def mm(a, bm):
            return jnp.dot(a, bm, preferred_element_type=f32)

        @pl.when(i < n_live)
        def _live():
            # conv1 (+ folded bn1/bias) as 3 banded matmuls, then ReLU (f32).
            y1 = mm(x_ref[0, 0], m1_ref[0])
            y1 = y1 + mm(x_ref[0, 1], m1_ref[1])
            y1 = y1 + mm(x_ref[0, 2], m1_ref[2])
            y1 = jnp.maximum(y1 * sb1_ref[0:1, :] + sb1_ref[1:2, :], 0.0)

            # pool #1: width pair-max on VPU/XLU; height pair-max + conv2 zero
            # padding live in the rp_a / rp_b selector matmuls.
            y1w = jnp.maximum(y1, pltpu.roll(y1, shift=shift1, axis=1)).astype(cdt)
            rsel = jnp.maximum(mm(rpa_ref[...], y1w),
                               mm(rpb_ref[...], y1w)).astype(cdt)   # [192, 128]

            # conv2 (+ folded bn2/bias; pool-1 lane compaction folded into m2f).
            y2 = mm(rsel[0:rows2], m2f_ref[0])
            y2 = y2 + mm(rsel[rows2:2 * rows2], m2f_ref[1])
            y2 = y2 + mm(rsel[2 * rows2:3 * rows2], m2f_ref[2])
            y2 = jnp.maximum(y2 * sb2_ref[0:1, :] + sb2_ref[1:2, :], 0.0)

            # pool #2 (same trick) then fc1 (NCHW flatten folded into wff).
            y2w = jnp.maximum(y2, pltpu.roll(y2, shift=shift2, axis=1)).astype(cdt)
            fsel = jnp.maximum(mm(sela_ref[...], y2w),
                               mm(selb_ref[...], y2w)).astype(cdt)  # [32, 128]
            feats = mm(fsel[0:TB], wff_ref[0])
            feats = feats + mm(fsel[TB:2 * TB], wff_ref[1])
            feats = feats + mm(fsel[2 * TB:3 * TB], wff_ref[2])
            feats = feats + mm(fsel[3 * TB:4 * TB], wff_ref[3])
            feats = jnp.maximum(feats + fb_ref[...], 0.0)           # [8, 32]

            # adapter: one lane-dense (8, 128) full-tile store.
            out_ref[...] = mm(feats.astype(cdt), wa_ref[...]) + ba_ref[...]

        @pl.when(i >= n_live)
        def _latent():
            # replayed features skip the backbone and go straight to the adapter.
            out_ref[...] = mm(lat_ref[0], wa_ref[...]) + ba_ref[...]

    def _const_spec(arr):
        nd = arr.ndim
        return pl.BlockSpec(arr.shape, lambda i, _n=nd: (0,) * _n)

    const_names = ("m1", "sb1", "rpa", "rpb", "m2f", "sb2",
                   "sela", "selb", "wff", "fb", "wa", "ba")
    const_args = [consts[k] for k in const_names]

    in_specs = (
        [pl.BlockSpec((1, 3, rows1, (w + 2) * cin),
                      lambda i: (jnp.minimum(i, n_live - 1), 0, 0, 0)),
         pl.BlockSpec((1, TB, d),
                      lambda i: (jnp.clip(i - n_live, 0, n_lat - 1), 0, 0))]
        + [_const_spec(a) for a in const_args])

    out = pl.pallas_call(
        kernel,
        grid=(n_steps,),
        in_specs=in_specs,
        out_specs=pl.BlockSpec((TB, 128), lambda i: (i, 0)),
        out_shape=jax.ShapeDtypeStruct((n_steps * TB, 128), f32),
        compiler_params=pltpu.CompilerParams(
            dimension_semantics=("parallel",)),
    )(xr, latent_tiles, *const_args)

    live = out[:b]
    if r:
        logits = jnp.concatenate([live, out[n_live * TB:n_live * TB + r]], axis=0)
    else:
        logits = live
    return logits[:, :num_classes]


def tinyml_forward_pallas(x_nchw, consts, latent_input=None, num_classes=10):
    """Logits for [live batch ; replayed latent features]."""
    shift1 = _roll_shift_for(_C1, _W * _C1)       # lane roll for pool-1 width max
    shift2 = _roll_shift_for(_C2, _W1 * _C2)      # lane roll for pool-2 width max
    return _forward_jit(x_nchw, latent_input, consts,
                        num_classes=num_classes, shift1=shift1, shift2=shift2)


# -----------------------------------------------------------------------------
# Pure-JAX reference (mirrors the PyTorch forward exactly, HIGHEST precision)
# -----------------------------------------------------------------------------
def tinyml_forward_ref(x_nchw, params, latent_input=None, eps=1e-5):
    hi = lax.Precision.HIGHEST

    def bn(z, p):
        g, b, m, v = p
        return (z - m[None, :, None, None]) / jnp.sqrt(v + eps)[None, :, None, None] \
            * g[None, :, None, None] + b[None, :, None, None]

    def mp2(z):
        n, c, hh, ww = z.shape
        return jnp.max(z.reshape(n, c, hh // 2, 2, ww // 2, 2), axis=(3, 5))

    z = lax.conv_general_dilated(x_nchw, params["conv1_w"], (1, 1), "SAME",
                                 dimension_numbers=("NCHW", "OIHW", "NCHW"),
                                 precision=hi)
    z = z + params["conv1_b"][None, :, None, None]
    z = jnp.maximum(mp2(bn(z, params["bn1"])), 0.0)
    z = lax.conv_general_dilated(z, params["conv2_w"], (1, 1), "SAME",
                                 dimension_numbers=("NCHW", "OIHW", "NCHW"),
                                 precision=hi)
    z = z + params["conv2_b"][None, :, None, None]
    z = jnp.maximum(mp2(bn(z, params["bn2"])), 0.0)
    z = z.reshape(z.shape[0], -1)
    feats = jnp.maximum(
        jnp.dot(z, params["fc1_w"].T, precision=hi) + params["fc1_b"], 0.0)
    if latent_input is not None:
        feats = jnp.concatenate([feats, latent_input], axis=0)
    return jnp.dot(feats, params["adapter_w"].T, precision=hi) + params["adapter_b"]


# -----------------------------------------------------------------------------
# Deterministic parameter init
# -----------------------------------------------------------------------------
def init_params(key):
    ks = jax.random.split(key, 12)
    p = {}
    p["conv1_w"] = 0.2 * jax.random.normal(ks[0], (8, 4, 3, 3), jnp.float32)
    p["conv1_b"] = 0.1 * jax.random.normal(ks[1], (8,), jnp.float32)
    p["bn1"] = (1.0 + 0.1 * jax.random.normal(ks[2], (8,), jnp.float32),   # gamma
                0.1 * jax.random.normal(ks[3], (8,), jnp.float32),         # beta
                0.05 * jax.random.normal(ks[4], (8,), jnp.float32),        # mean
                0.5 + jax.random.uniform(ks[5], (8,), jnp.float32))        # var
    p["conv2_w"] = 0.15 * jax.random.normal(ks[6], (16, 8, 3, 3), jnp.float32)
    p["conv2_b"] = 0.1 * jax.random.normal(ks[7], (16,), jnp.float32)
    p["bn2"] = (1.0 + 0.1 * jax.random.normal(ks[8], (16,), jnp.float32),
                0.1 * jax.random.normal(ks[9], (16,), jnp.float32),
                0.05 * jax.random.normal(ks[10], (16,), jnp.float32),
                0.5 + jax.random.uniform(ks[11], (16,), jnp.float32))
    k2 = jax.random.split(jax.random.PRNGKey(123), 4)
    p["fc1_w"] = 0.05 * jax.random.normal(k2[0], (32, 256), jnp.float32)   # (out,in)
    p["fc1_b"] = 0.05 * jax.random.normal(k2[1], (32,), jnp.float32)
    p["adapter_w"] = 0.1 * jax.random.normal(k2[2], (10, 32), jnp.float32)
    p["adapter_b"] = 0.1 * jax.random.normal(k2[3], (10,), jnp.float32)
    return p


if __name__ == "__main__":
    params = init_params(jax.random.PRNGKey(42))

    kx, kl = jax.random.split(jax.random.PRNGKey(0))
    x = jax.random.normal(kx, (2, 4, 16, 16), jnp.float32)        # NCHW batch
    latent = jax.random.normal(kl, (3, 32), jnp.float32)          # R x D replay feats

    ref = tinyml_forward_ref(x, params, latent)

    # Perf-recommended path: bf16 MXU operands, f32 accumulation / epilogues.
    consts = prepare_constants(params, jnp.bfloat16)
    logits = jax.block_until_ready(tinyml_forward_pallas(x, consts, latent))
    assert logits.shape == (5, 10), logits.shape
    assert jnp.allclose(logits, ref, rtol=5e-2, atol=5e-2), \
        float(jnp.max(jnp.abs(logits - ref)))

    # Same kernel with f32 operands: tighter numerical cross-check.
    consts32 = prepare_constants(params, jnp.float32)
    logits32 = jax.block_until_ready(tinyml_forward_pallas(x, consts32, latent))
    assert jnp.allclose(logits32, ref, rtol=2e-2, atol=2e-2), \
        float(jnp.max(jnp.abs(logits32 - ref)))

    # No-replay (latent_input=None) path.
    ref0 = tinyml_forward_ref(x, params, None)
    logits0 = jax.block_until_ready(tinyml_forward_pallas(x, consts, None))
    assert logits0.shape == (2, 10), logits0.shape
    assert jnp.allclose(logits0, ref0, rtol=5e-2, atol=5e-2), \
        float(jnp.max(jnp.abs(logits0 - ref0)))

    print("KERNEL_OK")
</pallas_src>

<mosaic_0001>
module attributes {stable_mosaic.version = 11 : i64} {
  func.func @probe(%arg0: memref<8x128xf32, #tpu.memory_space<vmem>>, %arg1: memref<8x128xf32, #tpu.memory_space<vmem>>) attributes {dimension_semantics = [], scalar_prefetch = 0 : i64, scratch_operands = 0 : i64, tpu.core_type = #tpu.core_type<tc>} {
    %c0 = arith.constant 0 : index
    %c0_0 = arith.constant 0 : index
    %0 = vector.load %arg0[%c0, %c0_0] : memref<8x128xf32, #tpu.memory_space<vmem>>, vector<8x128xf32>
    %c1_i32 = arith.constant 1 : i32
    %1 = tpu.dynamic_rotate %0 by %c1_i32 dim 1 : vector<8x128xf32>, i32 -> vector<8x128xf32>
    %c0_1 = arith.constant 0 : index
    %c0_2 = arith.constant 0 : index
    %2 = vector.load %arg1[%c0_1, %c0_2] : memref<8x128xf32, #tpu.memory_space<vmem>>, vector<8x128xf32>
    tpu.vector_store %arg1[%c0_1, %c0_2], %1 {strides = array<i32>} : memref<8x128xf32, #tpu.memory_space<vmem>>, vector<8x128xf32>,
    return
  }
}

</mosaic_0001>

<llo_original>
// kernel: tpu_custom_call.1
$region0: #{tpu_custom_call.1}
  #allocation0 [shape = 'u32[]', space=smem, size = 0x4, offset = 0x4, fixed_abs, tag = 'smem constant byte address 0x4 - core index']
  #allocation1 [shape = 'u32[144,128]{1,0:T(1,128)}', space=vmem, size = 0x12000, scoped, tag = 'internal scratch']
  %s0 = inlined_call_operand.hbm [shape: f32[8,128], index: 0, kind: input, shape index: {}]
  %s1 = inlined_call_operand.hbm [shape: f32[8,128], index: 1, kind: output, shape index: {}]
  %s2 = sld [smem:[#allocation0]]
  $region18: #{tpu_custom_call.1} parent=0
    _
  %s4 = ssub.s32 1, %s2
  %s5 = scalar_select 0, %s4, %s2
  $region1: #{tpu_custom_call.1} parent=0
    #allocation2 [shape = 'u8[4096]{0}', space=vmem, size = 0x1000, scoped, tag = 'input window, operand 0, single buffered']
    #allocation3 [shape = 's32[1]{0}', space=sflag, size = 0x4, scoped, tag = 'scoped memory for tpu_custom_call.1']
    #allocation4 [shape = 's32[1]{0}', space=sflag, size = 0x4, scoped, tag = 'scoped memory for tpu_custom_call.1']
    #allocation5 [shape = 'u8[4096]{0}', space=vmem, size = 0x1000, scoped, tag = 'output window, operand 0, single buffered']
    %6 = vsyncpa [#allocation3], 0
    %7 = vsyncpa [#allocation4], 0
    // Predicated region
    $region2: #{tpu_custom_call.1} parent=1 // pred_check
      _
    $region3: #{tpu_custom_call.1} parent=1 // pred_check_branch
      %9 = sbr.rel (0) target = $region5
    $region4: #{tpu_custom_call.1} parent=1 // pred_region
      %s11 = ssub.s32 128, 128
      %12 = vsyncadd [#allocation3], %s11
      %s14 = sshll.u32 [#allocation2], 4
      %s15 = int_to_ptr.vmem [resolvable:$true] %s14
      %17 = dma.hbm_to_vmem [thread:$0]  %s0, 128, %s15, [#allocation3]
    $region5: #{tpu_custom_call.1} parent=1 // pred_fallthru
      _
    // Predicated region
    $region6: #{tpu_custom_call.1} parent=1 // pred_check
      _
    $region7: #{tpu_custom_call.1} parent=1 // pred_check_branch
      %19 = sbr.rel (0) target = $region9
    $region8: #{tpu_custom_call.1} parent=1 // pred_region
      %20 = dma.done [#allocation3], 128
    $region9: #{tpu_custom_call.1} parent=1 // pred_fallthru
      _
    %v21 = vld [vmem:[#allocation2] sm:$0xff]
    %22 = vrot.lane.b32.xlu0 %v21, 1
    %v23 = vpop.permute.xlu0 %22
    %24 = vst [vmem:[#allocation5] sm:$0xff] %v23
    // Predicated region
    $region10: #{tpu_custom_call.1} parent=1 // pred_check
      _
    $region11: #{tpu_custom_call.1} parent=1 // pred_check_branch
      %26 = sbr.rel (0) target = $region13
    $region12: #{tpu_custom_call.1} parent=1 // pred_region
      %s28 = ssub.s32 128, 128
      %29 = vsyncadd [#allocation4], %s28
      %s31 = sshll.u32 [#allocation5], 4
      %s32 = int_to_ptr.vmem [resolvable:$true] %s31
      %34 = dma.vmem_to_hbm [thread:$0]  %s32, 128, %s1, [#allocation4]
    $region13: #{tpu_custom_call.1} parent=1 // pred_fallthru
      _
    // Predicated region
    $region14: #{tpu_custom_call.1} parent=1 // pred_check
      _
    $region15: #{tpu_custom_call.1} parent=1 // pred_check_branch
      %36 = sbr.rel (0) target = $region17
    $region16: #{tpu_custom_call.1} parent=1 // pred_region
      %37 = dma.done [#allocation4], 128
    $region17: #{tpu_custom_call.1} parent=1 // pred_fallthru
      _
    %38 = vsyncpa [#allocation3], 1
    %39 = vsyncpa [#allocation4], 1

</llo_original>
